<compile_context>
chip_gen: v7x
topology: tpu7x:2x2x1
jax: 0.10.0
libtpu: 0.0.40
codegen_flags: <defaults>
</compile_context>

<pallas_src>
import functools

import jax
import jax.numpy as jnp
from jax.experimental import pallas as pl
from jax.experimental.pallas import tpu as pltpu

EPS = 1e-5                      # matches CosineSimilarity(1, 1e-5)
_D_CHUNK = 512                  # feature-axis chunk (lanes) for f32 math
_MAX_TILE_BYTES = 8 * 1024 * 1024  # per-input-tile upper bound (~HBM roofline)


def _contrastive_loss_kernel(x1_ref, x2_ref, label_ref, out_ref, acc_ref, *,
                             margin, batch, needs_mask):
    c = pl.program_id(0)          # core-parallel axis (v7x megacore split)
    i = pl.program_id(1)          # streaming / reduction axis
    steps = pl.num_programs(1)
    block_rows, feat = x1_ref.shape

    @pl.when(i == 0)
    def _():
        acc_ref[...] = jnp.zeros_like(acc_ref)

    # Cosine-similarity pieces.  Feature axis processed in <=512-lane chunks so
    # the in-register f32 temporaries stay small even for very wide features.
    w12 = jnp.zeros((block_rows, 1), jnp.float32)
    w1 = jnp.zeros((block_rows, 1), jnp.float32)
    w2 = jnp.zeros((block_rows, 1), jnp.float32)
    for lo in range(0, feat, _D_CHUNK):
        hi = min(feat, lo + _D_CHUNK)
        a = x1_ref[:, lo:hi].astype(jnp.float32)
        b = x2_ref[:, lo:hi].astype(jnp.float32)
        w12 = w12 + jnp.sum(a * b, axis=1, keepdims=True)
        w1 = w1 + jnp.sum(a * a, axis=1, keepdims=True)
        w2 = w2 + jnp.sum(b * b, axis=1, keepdims=True)

    lab = label_ref[...].astype(jnp.float32)            # (TB, 1)

    # PyTorch CosineSimilarity semantics: w12 / sqrt(max(w1*w2, eps^2)).
    cs = w12 * jax.lax.rsqrt(jnp.maximum(w1 * w2, jnp.float32(EPS * EPS)))
    d = 1.0 - cs                                         # cosine distance
    hinge = jnp.maximum(jnp.float32(margin) - d, 0.0)
    per_sample = (1.0 - lab) * (d * d) + lab * (hinge * hinge)   # (TB, 1)

    if needs_mask:
        # Mask rows past the true batch (padded tail tile and/or the duplicated
        # clamped block when the block count is odd on the 2-core split).
        row = (jax.lax.broadcasted_iota(jnp.int32, per_sample.shape, 0)
               + (c * steps + i) * block_rows)
        per_sample = jnp.where(row < batch, per_sample, 0.0)

    acc_ref[...] += per_sample                           # VMEM vector accumulate

    @pl.when(i == steps - 1)
    def _():
        # Collapse to a scalar partial once per core; divide by batch outside.
        out_ref[0, 0] = jnp.sum(acc_ref[...])


def _vmem_capacity_bytes():
    try:
        info = pltpu.get_tpu_info()
        cap = getattr(info, "vmem_capacity_bytes", None)
        if cap:
            return int(cap)
    except Exception:
        pass
    return 64 * 1024 * 1024      # conservative fallback (v7x per-core VMEM)


def _tiling_plan(batch, feat, itemsize):
    """Pick (block_rows, scoped_vmem_limit) from the chip's VMEM capacity."""
    phys = _vmem_capacity_bytes()
    scoped = int(max(32 << 20, min((phys * 3) // 4, 96 << 20)))
    if batch <= 8:
        return batch, scoped     # block == full batch dim (allowed)
    pipeline_budget = max(16 << 20, scoped - (8 << 20))  # headroom for temps
    # 2 inputs x 2 pipeline buffers (native dtype) + chunked f32 temporaries
    # + labels/acc (small).
    per_row = 4 * feat * itemsize + 16 * min(feat, _D_CHUNK) + 64
    cap_budget = pipeline_budget // per_row
    cap_tile = max(1, _MAX_TILE_BYTES // max(feat * itemsize, 1))
    rows = min(batch, cap_budget, cap_tile)
    rows = max(8, (rows // 8) * 8)
    return int(rows), scoped


def contrastive_loss(output1, output2, label, *, margin=0.2, block_rows=None):
    """output1, output2: (B, D) float arrays; label: (B,) or (B, 1).
    Returns a scalar f32 loss."""
    batch, feat = output1.shape
    itemsize = jnp.dtype(output1.dtype).itemsize
    auto_rows, scoped_vmem = _tiling_plan(batch, feat, itemsize)
    if block_rows is None:
        block_rows = auto_rows
    block_rows = min(int(block_rows), batch)

    # Labels travel in (near-)native dtype; cast to f32 happens in-kernel.
    if label.dtype == jnp.bool_:
        label = label.astype(jnp.int32)
    label2d = jnp.reshape(label, (batch, 1))

    nblocks = pl.cdiv(batch, block_rows)
    ncores = 2 if nblocks >= 2 else 1          # 2-way split feeds both v7x TCs
    spc = pl.cdiv(nblocks, ncores)             # steps per core
    needs_mask = (ncores * spc * block_rows) != batch

    def in_map(c, i):
        # Clamp so the (possibly) duplicated last step of core 1 stays in
        # bounds; its rows are zeroed by the in-kernel mask.
        return (jnp.minimum(c * spc + i, nblocks - 1), 0)

    kernel = functools.partial(
        _contrastive_loss_kernel,
        margin=float(margin), batch=batch, needs_mask=bool(needs_mask))

    cost = pl.CostEstimate(
        flops=6 * batch * feat + 12 * batch,
        transcendentals=batch,
        bytes_accessed=(2 * batch * feat * itemsize
                        + batch * jnp.dtype(label2d.dtype).itemsize
                        + 4 * ncores),
    )

    partials = pl.pallas_call(
        kernel,
        out_shape=jax.ShapeDtypeStruct((ncores, 1), jnp.float32),
        grid=(ncores, spc),
        in_specs=[
            pl.BlockSpec((block_rows, feat), in_map),
            pl.BlockSpec((block_rows, feat), in_map),
            pl.BlockSpec((block_rows, 1), in_map),
        ],
        out_specs=pl.BlockSpec((1, 1), lambda c, i: (c, 0),
                               memory_space=pltpu.MemorySpace.SMEM),
        scratch_shapes=[pltpu.VMEM((block_rows, 1), jnp.float32)],
        compiler_params=pltpu.CompilerParams(
            dimension_semantics=("parallel", "arbitrary"),
            vmem_limit_bytes=scoped_vmem),
        cost_estimate=cost,
    )(output1, output2, label2d)

    return jnp.sum(partials) / jnp.float32(batch)


def contrastive_loss_ref(output1, output2, label, *, margin=0.2):
    """Pure-JAX reference mirroring the PyTorch module."""
    x1 = output1.astype(jnp.float32)
    x2 = output2.astype(jnp.float32)
    lab = jnp.reshape(label, (-1,)).astype(jnp.float32)
    w12 = jnp.sum(x1 * x2, axis=1)
    w1 = jnp.sum(x1 * x1, axis=1)
    w2 = jnp.sum(x2 * x2, axis=1)
    cs = w12 / jnp.sqrt(jnp.maximum(w1 * w2, EPS * EPS))
    d = 1.0 - cs
    return jnp.mean((1.0 - lab) * d ** 2
                    + lab * jnp.maximum(margin - d, 0.0) ** 2)


if __name__ == "__main__":
    key = jax.random.PRNGKey(0)
    keys = jax.random.split(key, 12)

    # Case 1: tiny f32 batch (single block, single core).
    B, D = 8, 32
    o1 = jax.random.normal(keys[0], (B, D), dtype=jnp.float32)
    o2 = jax.random.normal(keys[1], (B, D), dtype=jnp.float32)
    lab = jax.random.bernoulli(keys[2], 0.5, (B,)).astype(jnp.float32)
    got = jax.block_until_ready(contrastive_loss(o1, o2, lab))
    want = jax.block_until_ready(contrastive_loss_ref(o1, o2, lab))
    assert jnp.allclose(got, want, rtol=1e-5, atol=1e-6), (got, want)

    # Case 2: bf16 inputs, batch not divisible by tile (auto tiling, tail
    # mask, 2-way core axis with one step per core).
    B2, D2 = 20, 128
    o1b = jax.random.normal(keys[3], (B2, D2), dtype=jnp.bfloat16)
    o2b = jax.random.normal(keys[4], (B2, D2), dtype=jnp.bfloat16)
    lab2 = jax.random.bernoulli(keys[5], 0.5, (B2,)).astype(jnp.float32)
    got2 = jax.block_until_ready(contrastive_loss(o1b, o2b, lab2))
    want2 = jax.block_until_ready(contrastive_loss_ref(o1b, o2b, lab2))
    assert jnp.allclose(got2, want2, rtol=2e-3, atol=2e-3), (got2, want2)

    # Case 3: odd block count -> exercises clamped index map, duplicate-block
    # masking on the core axis, and multi-step accumulation; non-default margin.
    B3, D3 = 72, 128
    o1c = jax.random.normal(keys[6], (B3, D3), dtype=jnp.float32)
    o2c = jax.random.normal(keys[7], (B3, D3), dtype=jnp.float32)
    lab3 = jax.random.bernoulli(keys[8], 0.5, (B3,)).astype(jnp.float32)
    got3 = jax.block_until_ready(
        contrastive_loss(o1c, o2c, lab3, margin=0.5, block_rows=16))
    want3 = jax.block_until_ready(
        contrastive_loss_ref(o1c, o2c, lab3, margin=0.5))
    assert jnp.allclose(got3, want3, rtol=1e-5, atol=1e-6), (got3, want3)

    # Case 4: evenly divisible batch -> mask-free fast path, both cores with
    # multiple steps each.
    B4, D4 = 64, 256
    o1d = jax.random.normal(keys[9], (B4, D4), dtype=jnp.bfloat16)
    o2d = jax.random.normal(keys[10], (B4, D4), dtype=jnp.bfloat16)
    lab4 = jax.random.bernoulli(keys[11], 0.5, (B4,)).astype(jnp.float32)
    got4 = jax.block_until_ready(contrastive_loss(o1d, o2d, lab4, block_rows=8))
    want4 = jax.block_until_ready(contrastive_loss_ref(o1d, o2d, lab4))
    assert jnp.allclose(got4, want4, rtol=2e-3, atol=2e-3), (got4, want4)

    print("KERNEL_OK")
</pallas_src>

<mosaic_0001>
module attributes {stable_mosaic.version = 11 : i64} {
  func.func @_contrastive_loss_kernel(%arg0: i32, %arg1: i32, %arg2: memref<8x32xf32, #tpu.memory_space<vmem>>, %arg3: memref<8x32xf32, #tpu.memory_space<vmem>>, %arg4: memref<8x1xf32, #tpu.memory_space<vmem>>, %arg5: memref<1x1xf32, #tpu.memory_space<smem>>, %arg6: memref<8x1xf32, #tpu.memory_space<vmem>>) attributes {dimension_semantics = [#tpu.dimension_semantics<parallel>, #tpu.dimension_semantics<arbitrary>], iteration_bounds = array<i64: 1, 1>, scalar_prefetch = 0 : i64, scratch_operands = 1 : i64, tpu.core_type = #tpu.core_type<tc>, window_params = [{transform_indices = @transform_0, window_bounds = array<i64: 8, 32>}, {transform_indices = @transform_1, window_bounds = array<i64: 8, 32>}, {transform_indices = @transform_2, window_bounds = array<i64: 8, 1>}, {transform_indices = @transform_3, window_bounds = array<i64: 1, 1>}]} {
    %c0_i32 = arith.constant 0 : i32
    %0 = arith.cmpi eq, %arg1, %c0_i32 : i32
    %1 = arith.extui %0 : i1 to i32
    %c0_i32_0 = arith.constant 0 : i32
    %2 = arith.cmpi ne, %1, %c0_i32_0 : i32
    scf.if %2 {
      %cst_22 = arith.constant 0.000000e+00 : f32
      %45 = vector.broadcast %cst_22 : f32 to vector<8x1xf32>
      %c0_23 = arith.constant 0 : index
      %c0_24 = arith.constant 0 : index
      %46 = vector.load %arg6[%c0_23, %c0_24] : memref<8x1xf32, #tpu.memory_space<vmem>>, vector<8x1xf32>
      tpu.vector_store %arg6[%c0_23, %c0_24], %45 {strides = array<i32>} : memref<8x1xf32, #tpu.memory_space<vmem>>, vector<8x1xf32>,
    } else {
    }
    %cst = arith.constant 0.000000e+00 : f32
    %3 = vector.broadcast %cst : f32 to vector<8x1xf32>
    %cst_1 = arith.constant 0.000000e+00 : f32
    %4 = vector.broadcast %cst_1 : f32 to vector<8x1xf32>
    %cst_2 = arith.constant 0.000000e+00 : f32
    %5 = vector.broadcast %cst_2 : f32 to vector<8x1xf32>
    %c0 = arith.constant 0 : index
    %c0_3 = arith.constant 0 : index
    %6 = vector.load %arg2[%c0, %c0_3] : memref<8x32xf32, #tpu.memory_space<vmem>>, vector<8x32xf32>
    %c0_4 = arith.constant 0 : index
    %c0_5 = arith.constant 0 : index
    %7 = vector.load %arg3[%c0_4, %c0_5] : memref<8x32xf32, #tpu.memory_space<vmem>>, vector<8x32xf32>
    %8 = arith.mulf %6, %7 : vector<8x32xf32>
    %cst_6 = arith.constant dense<0.000000e+00> : vector<8xf32>
    %9 = vector.multi_reduction <add>, %8, %cst_6 [1] : vector<8x32xf32> to vector<8xf32>
    %10 = vector.shape_cast %9 : vector<8xf32> to vector<8x1xf32>
    %11 = arith.addf %3, %10 : vector<8x1xf32>
    %12 = arith.mulf %6, %6 : vector<8x32xf32>
    %cst_7 = arith.constant dense<0.000000e+00> : vector<8xf32>
    %13 = vector.multi_reduction <add>, %12, %cst_7 [1] : vector<8x32xf32> to vector<8xf32>
    %14 = vector.shape_cast %13 : vector<8xf32> to vector<8x1xf32>
    %15 = arith.addf %4, %14 : vector<8x1xf32>
    %16 = arith.mulf %7, %7 : vector<8x32xf32>
    %cst_8 = arith.constant dense<0.000000e+00> : vector<8xf32>
    %17 = vector.multi_reduction <add>, %16, %cst_8 [1] : vector<8x32xf32> to vector<8xf32>
    %18 = vector.shape_cast %17 : vector<8xf32> to vector<8x1xf32>
    %19 = arith.addf %5, %18 : vector<8x1xf32>
    %c0_9 = arith.constant 0 : index
    %c0_10 = arith.constant 0 : index
    %20 = vector.load %arg4[%c0_9, %c0_10] : memref<8x1xf32, #tpu.memory_space<vmem>>, vector<8x1xf32>
    %21 = arith.mulf %15, %19 : vector<8x1xf32>
    %cst_11 = arith.constant 1.000000e-10 : f32
    %22 = vector.broadcast %cst_11 : f32 to vector<8x1xf32>
    %23 = arith.maximumf %21, %22 : vector<8x1xf32>
    %24 = math.rsqrt %23 : vector<8x1xf32>
    %25 = arith.mulf %11, %24 : vector<8x1xf32>
    %cst_12 = arith.constant 1.000000e+00 : f32
    %26 = vector.broadcast %cst_12 : f32 to vector<8x1xf32>
    %27 = arith.subf %26, %25 : vector<8x1xf32>
    %cst_13 = arith.constant 2.000000e-01 : f32
    %28 = vector.broadcast %cst_13 : f32 to vector<8x1xf32>
    %29 = arith.subf %28, %27 : vector<8x1xf32>
    %cst_14 = arith.constant 0.000000e+00 : f32
    %30 = vector.broadcast %cst_14 : f32 to vector<8x1xf32>
    %31 = arith.maximumf %29, %30 : vector<8x1xf32>
    %cst_15 = arith.constant 1.000000e+00 : f32
    %32 = vector.broadcast %cst_15 : f32 to vector<8x1xf32>
    %33 = arith.subf %32, %20 : vector<8x1xf32>
    %34 = arith.mulf %27, %27 : vector<8x1xf32>
    %35 = arith.mulf %33, %34 : vector<8x1xf32>
    %36 = arith.mulf %31, %31 : vector<8x1xf32>
    %37 = arith.mulf %20, %36 : vector<8x1xf32>
    %38 = arith.addf %35, %37 : vector<8x1xf32>
    %c0_16 = arith.constant 0 : index
    %c0_17 = arith.constant 0 : index
    %39 = vector.load %arg6[%c0_16, %c0_17] : memref<8x1xf32, #tpu.memory_space<vmem>>, vector<8x1xf32>
    %40 = arith.addf %39, %38 : vector<8x1xf32>
    %c0_18 = arith.constant 0 : index
    %c0_19 = arith.constant 0 : index
    %41 = vector.load %arg6[%c0_18, %c0_19] : memref<8x1xf32, #tpu.memory_space<vmem>>, vector<8x1xf32>
    tpu.vector_store %arg6[%c0_18, %c0_19], %40 {strides = array<i32>} : memref<8x1xf32, #tpu.memory_space<vmem>>, vector<8x1xf32>,
    %c0_i32_20 = arith.constant 0 : i32
    %42 = arith.cmpi eq, %arg1, %c0_i32_20 : i32
    %43 = arith.extui %42 : i1 to i32
    %c0_i32_21 = arith.constant 0 : i32
    %44 = arith.cmpi ne, %43, %c0_i32_21 : i32
    scf.if %44 {
      %c0_22 = arith.constant 0 : index
      %c0_23 = arith.constant 0 : index
      %45 = vector.load %arg6[%c0_22, %c0_23] : memref<8x1xf32, #tpu.memory_space<vmem>>, vector<8x1xf32>
      %46 = vector.shape_cast %45 : vector<8x1xf32> to vector<1x8x1xf32>
      %cst_24 = arith.constant dense<0.000000e+00> : vector<1xf32>
      %47 = vector.multi_reduction <add>, %46, %cst_24 [1, 2] : vector<1x8x1xf32> to vector<1xf32>
      %48 = vector.shape_cast %47 : vector<1xf32> to vector<1x1x1xf32>
      %49 = vector.extract %48[0, 0, 0] : f32 from vector<1x1x1xf32>
      %c0_25 = arith.constant 0 : index
      %c0_26 = arith.constant 0 : index
      %50 = memref.load %arg5[%c0_25, %c0_26] : memref<1x1xf32, #tpu.memory_space<smem>>
      memref.store %49, %arg5[%c0_25, %c0_26] : memref<1x1xf32, #tpu.memory_space<smem>>
    } else {
    }
    return
  }
  func.func @transform_0(%arg0: i32, %arg1: i32) -> (i32, i32) {
    %c1_i32 = arith.constant 1 : i32
    %0 = arith.muli %arg0, %c1_i32 : i32
    %1 = arith.addi %0, %arg1 : i32
    %c0_i32 = arith.constant 0 : i32
    %2 = arith.minsi %1, %c0_i32 : i32
    %c0_i32_0 = arith.constant 0 : i32
    %c0_i32_1 = arith.constant 0 : i32
    return %2, %c0_i32_0 : i32, i32
  }
  func.func @transform_1(%arg0: i32, %arg1: i32) -> (i32, i32) {
    %c1_i32 = arith.constant 1 : i32
    %0 = arith.muli %arg0, %c1_i32 : i32
    %1 = arith.addi %0, %arg1 : i32
    %c0_i32 = arith.constant 0 : i32
    %2 = arith.minsi %1, %c0_i32 : i32
    %c0_i32_0 = arith.constant 0 : i32
    %c0_i32_1 = arith.constant 0 : i32
    return %2, %c0_i32_0 : i32, i32
  }
  func.func @transform_2(%arg0: i32, %arg1: i32) -> (i32, i32) {
    %c1_i32 = arith.constant 1 : i32
    %0 = arith.muli %arg0, %c1_i32 : i32
    %1 = arith.addi %0, %arg1 : i32
    %c0_i32 = arith.constant 0 : i32
    %2 = arith.minsi %1, %c0_i32 : i32
    %c0_i32_0 = arith.constant 0 : i32
    %c0_i32_1 = arith.constant 0 : i32
    return %2, %c0_i32_0 : i32, i32
  }
  func.func @transform_3(%arg0: i32, %arg1: i32) -> (i32, i32) {
    %c0_i32 = arith.constant 0 : i32
    %c0_i32_0 = arith.constant 0 : i32
    return %arg0, %c0_i32 : i32, i32
  }
}

</mosaic_0001>

<llo_original>
// kernel: tpu_custom_call.1
$region0: #{tpu_custom_call.1}
  #allocation0 [shape = 'u32[]', space=smem, size = 0x4, offset = 0x4, fixed_abs, tag = 'smem constant byte address 0x4 - core index']
  #allocation1 [shape = 'u32[144,128]{1,0:T(1,128)}', space=vmem, size = 0x12000, scoped, tag = 'internal scratch']
  #allocation2 [shape = 'f32[8,1]{1,0:T(8,128)}', space=vmem, size = 0x1000, scoped, tag = 'scratch operand']
  %s0 = inlined_call_operand.vmem [shape: f32[8,32], index: 0, kind: input, shape index: {}]
  %s1 = inlined_call_operand.hbm [shape: f32[8,32], index: 1, kind: input, shape index: {}]
  %s2 = inlined_call_operand.vmem [shape: f32[8,1], index: 2, kind: input, shape index: {}]
  %s3 = inlined_call_operand.hbm [shape: f32[1,1], index: 3, kind: output, shape index: {}]
  %s4 = sld [smem:[#allocation0]]
  $region34: #{tpu_custom_call.1} parent=0
    _
  %s6 = ssub.s32 1, %s4
  %s7 = scalar_select 0, %s6, %s4
  $region1: #{tpu_custom_call.1} parent=0
    #allocation3 [shape = 'u8[4096]{0}', space=vmem, size = 0x1000, scoped, tag = 'input window, operand 1, single buffered']
    #allocation4 [shape = 's32[1]{0}', space=sflag, size = 0x4, scoped, tag = 'scoped memory for tpu_custom_call.1']
    #allocation5 [shape = 's32[1]{0}', space=sflag, size = 0x4, scoped, tag = 'scoped memory for tpu_custom_call.1']
    #allocation6 [shape = 'u8[512]{0}', space=smem, size = 0x200, scoped, tag = 'output window, operand 0, single buffered']
    %8 = vsyncpa [#allocation4], 0
    %9 = vsyncpa [#allocation5], 0
    // Predicated region
    $region2: #{tpu_custom_call.1} parent=1 // pred_check
      _
    $region3: #{tpu_custom_call.1} parent=1 // pred_check_branch
      %11 = sbr.rel (0) target = $region5
    $region4: #{tpu_custom_call.1} parent=1 // pred_region
      %s12 = sadd.s32 0, 0
      %p13 = scmp.lt.s32.totalorder %s12, 0
      %s14 = scalar_select %p13, %s12, 0
      %p15 = scmp.lt.s32.totalorder %s14, 0
      %s16 = scalar_select %p15, %s14, 0
      %s17 = smul.addr %s16, 8
      %s18 = scalar_lea.vmem %s0, %s17
      %s19 = sadd.s32 0, 0
      %p20 = scmp.lt.s32.totalorder %s19, 0
      %s21 = scalar_select %p20, %s19, 0
    $region5: #{tpu_custom_call.1} parent=1 // pred_fallthru
      _
    // Predicated region
    $region6: #{tpu_custom_call.1} parent=1 // pred_check
      _
    $region7: #{tpu_custom_call.1} parent=1 // pred_check_branch
      %23 = sbr.rel (0) target = $region9
    $region8: #{tpu_custom_call.1} parent=1 // pred_region
      %s24 = sadd.s32 0, 0
      %p25 = scmp.lt.s32.totalorder %s24, 0
      %s26 = scalar_select %p25, %s24, 0
      %s28 = ssub.s32 128, 128
      %29 = vsyncadd [#allocation4], %s28
      %s30 = smul.addr %s26, 128
      %s31 = scalar_lea.hbm %s1, %s30
      %s33 = sshll.u32 [#allocation3], 4
      %s34 = int_to_ptr.vmem [resolvable:$true] %s33
      %36 = dma.hbm_to_vmem [thread:$0]  %s31, 128, %s34, [#allocation4]
    $region9: #{tpu_custom_call.1} parent=1 // pred_fallthru
      _
    // Predicated region
    $region10: #{tpu_custom_call.1} parent=1 // pred_check
      _
    $region11: #{tpu_custom_call.1} parent=1 // pred_check_branch
      %38 = sbr.rel (0) target = $region13
    $region12: #{tpu_custom_call.1} parent=1 // pred_region
      %s39 = sadd.s32 0, 0
      %p40 = scmp.lt.s32.totalorder %s39, 0
      %s41 = scalar_select %p40, %s39, 0
      %p42 = scmp.lt.s32.totalorder %s41, 0
      %s43 = scalar_select %p42, %s41, 0
      %s44 = smul.addr %s43, 8
      %s45 = scalar_lea.vmem %s2, %s44
      %s46 = sadd.s32 0, 0
      %p47 = scmp.lt.s32.totalorder %s46, 0
      %s48 = scalar_select %p47, %s46, 0
    $region13: #{tpu_custom_call.1} parent=1 // pred_fallthru
      _
    // Predicated region
    $region14: #{tpu_custom_call.1} parent=1 // pred_check
      _
    $region15: #{tpu_custom_call.1} parent=1 // pred_check_branch
      %50 = sbr.rel (0) target = $region17
    $region16: #{tpu_custom_call.1} parent=1 // pred_region
      %51 = dma.done [#allocation4], 128
    $region17: #{tpu_custom_call.1} parent=1 // pred_fallthru
      _
    %s52 = sadd.s32 0, 0
    %p53 = scmp.lt.s32.totalorder %s52, 0
    %s54 = scalar_select %p53, %s52, 0
    %p55 = scmp.lt.s32.totalorder %s54, 0
    %s56 = scalar_select %p55, %s54, 0
    %s57 = smul.addr %s56, 8
    %s58 = scalar_lea.vmem %s0, %s57
    %s59 = sadd.s32 0, 0
    %p60 = scmp.lt.s32.totalorder %s59, 0
    %s61 = scalar_select %p60, %s59, 0
    %p62 = scmp.lt.s32.totalorder %s61, 0
    %s63 = scalar_select %p62, %s61, 0
    %s64 = smul.addr %s63, 8
    %s65 = scalar_lea.vmem %s2, %s64
    %s66 = sadd.s32 0, 0
    %p67 = scmp.lt.s32.totalorder %s66, 0
    %s68 = scalar_select %p67, %s66, 0
    %p69 = scmp.lt.s32.totalorder %s68, 0
    %s70 = scalar_select %p69, %s68, 0
    %s71 = smul.addr %s70, 8
    %s72 = scalar_lea.vmem %s0, %s71
    %s73 = sadd.s32 0, 0
    %p74 = scmp.lt.s32.totalorder %s73, 0
    %s75 = scalar_select %p74, %s73, 0
    %s76 = sadd.s32 0, 0
    %p77 = scmp.lt.s32.totalorder %s76, 0
    %s78 = scalar_select %p77, %s76, 0
    %s79 = sadd.s32 0, 0
    %p80 = scmp.lt.s32.totalorder %s79, 0
    %s81 = scalar_select %p80, %s79, 0
    %p82 = scmp.lt.s32.totalorder %s81, 0
    %s83 = scalar_select %p82, %s81, 0
    %s84 = smul.addr %s83, 8
    %s85 = scalar_lea.vmem %s2, %s84
    %s86 = sadd.s32 0, 0
    %p87 = scmp.lt.s32.totalorder %s86, 0
    %s88 = scalar_select %p87, %s86, 0
    %p89 = scmp.eq.s32.totalorder 0, 0
    // Predicated region
    $region18: #{tpu_custom_call.1} parent=1 // pred_check
      %p90 = pneg %p89
    $region19: #{tpu_custom_call.1} parent=1 // pred_check_branch
      %92 = sbr.rel (%p90) target = $region21
    $region20: #{tpu_custom_call.1} parent=1 // pred_region
      %vm93 = vcmask 7168
      %94 = vst.msk [vmem:[#allocation2] sm:$0xff] %vm93, 0.0
    $region21: #{tpu_custom_call.1} parent=1 // pred_fallthru
      _
    %v95 = vld [vmem:[%s72] sm:$0xff]
    %v96 = vld [vmem:[#allocation3] sm:$0xff]
    %v97 = vmul.f32 %v95, %v96
    %vm98 = vcmask 261120
    %v99 = vsel %vm98, %v97, 0.0
    %100 = vadd.xlane.f32.xlu0 %v99
    %v101 = vpop.xlane.xlu0 %100
    %v102 = vadd.f32 %v101, 0.0
    %v103 = vmul.f32 %v95, %v95
    %v104 = vsel %vm98, %v103, 0.0
    %105 = vadd.xlane.f32.xlu0 %v104
    %v106 = vpop.xlane.xlu0 %105
    %v107 = vadd.f32 %v106, 0.0
    %v108 = vmul.f32 %v96, %v96
    %v109 = vsel %vm98, %v108, 0.0
    %110 = vadd.xlane.f32.xlu0 %v109
    %v111 = vpop.xlane.xlu0 %110
    %v112 = vadd.f32 %v111, 0.0
    %v113 = vld [vmem:[%s85] sm:$0xff]
    %v114 = vmul.f32 %v107, %v112
    %v115 = vmax.f32 %v114, 1e-10
    %v116 = vrsqrt.pop %v115
    %v117 = vmul.f32 %v102, %v116
    %v118 = vsub.f32 1.0, %v117
    %v119 = vsub.f32 0.2, %v118
    %v120 = vmax.f32 %v119, 0.0
    %v121 = vsub.f32 1.0, %v113
    %v122 = vmul.f32 %v118, %v118
    %v123 = vmul.f32 %v121, %v122
    %v124 = vmul.f32 %v120, %v120
    %v125 = vmul.f32 %v113, %v124
    %v126 = vadd.f32 %v123, %v125
    %v127 = vld [vmem:[#allocation2] sm:$0xff]
    %v128 = vadd.f32 %v127, %v126
    %vm129 = vcmask 7168
    %130 = vst.msk [vmem:[#allocation2] sm:$0xff] %vm129, %v128
    // Predicated region
    $region22: #{tpu_custom_call.1} parent=1 // pred_check
      %p131 = pneg %p89
    $region23: #{tpu_custom_call.1} parent=1 // pred_check_branch
      %133 = sbr.rel (%p131) target = $region25
    $region24: #{tpu_custom_call.1} parent=1 // pred_region
      %v134 = vld [vmem:[#allocation2] sm:$0xff]
      %v135 = vsel %vm129, %v134, 0.0
      %136 = vadd.xlane.f32.xlu0 %v135
      %v137 = vpop.xlane.xlu0 %136
      %v138 = vrot.slane %v137, 4
      %v139 = vadd.f32 %v137, %v138
      %v140 = vrot.slane %v139, 2
      %v141 = vadd.f32 %v139, %v140
      %v142 = vrot.slane %v141, 1
      %v143 = vadd.f32 %v141, %v142
      %s144 = vtos %v143
      %s145 = scalar_lea.smem [#allocation6], 0
      %146 = sst [smem:[%s145]] %s144
    $region25: #{tpu_custom_call.1} parent=1 // pred_fallthru
      _
    // Predicated region
    $region26: #{tpu_custom_call.1} parent=1 // pred_check
      _
    $region27: #{tpu_custom_call.1} parent=1 // pred_check_branch
      %148 = sbr.rel (0) target = $region29
    $region28: #{tpu_custom_call.1} parent=1 // pred_region
      %s150 = ssub.s32 16, 16
      %151 = vsyncadd [#allocation5], %s150
      %154 = dma.smem_to_hbm [#allocation6], 16, %s3, [#allocation5]
    $region29: #{tpu_custom_call.1} parent=1 // pred_fallthru
      _
    // Predicated region
    $region30: #{tpu_custom_call.1} parent=1 // pred_check
      _
    $region31: #{tpu_custom_call.1} parent=1 // pred_check_branch
      %156 = sbr.rel (0) target = $region33
    $region32: #{tpu_custom_call.1} parent=1 // pred_region
      %157 = dma.done [#allocation5], 16
    $region33: #{tpu_custom_call.1} parent=1 // pred_fallthru
      _
    %158 = sfence
    %159 = vsyncpa [#allocation4], 1
    %160 = vsyncpa [#allocation5], 1

</llo_original>
